<compile_context>
chip_gen: v6e
topology: v6e:2x2x1
jax: 0.10.0
libtpu: 0.0.40
codegen_flags: <defaults>
</compile_context>

<pallas_src>
import functools

import jax
import jax.numpy as jnp
from jax import lax
from jax.experimental import pallas as pl
from jax.experimental.pallas import tpu as pltpu

LANES = 128
NSPLIT = 2                 # split of the reduce grid across TensorCores (v7x)
FUSED_CHUNK_ROWS = 2048    # 1 MiB f32 chunks for the fused path's spike phase


def _device_tuning():
    """Per-generation tile sizes / VMEM caps / semantics."""
    try:
        kind = jax.devices()[0].device_kind.lower()
    except Exception:  # pragma: no cover - defensive
        kind = ""
    if ("v7" in kind) or ("tpu7" in kind) or ("7x" in kind):
        # 64 MiB VMEM per TC, 2 TCs, fast HBM -> bigger tiles, smaller caps.
        return dict(block_rows=4096, fused_cap=20 << 20, vmem_limit=48 << 20,
                    core_parallel=True, f32_compare=False)
    if ("v6" in kind) or ("trillium" in kind):
        return dict(block_rows=2048, fused_cap=40 << 20, vmem_limit=100 << 20,
                    core_parallel=False, f32_compare=False)
    if ("v5e" in kind) or ("v5 lite" in kind) or ("v5lite" in kind):
        # v5e VPU has no bf16 path -> keep f32 compares.
        return dict(block_rows=2048, fused_cap=40 << 20, vmem_limit=100 << 20,
                    core_parallel=False, f32_compare=True)
    # Unknown / v4 / v5p / interpreter: conservative defaults.
    return dict(block_rows=2048, fused_cap=24 << 20, vmem_limit=64 << 20,
                core_parallel=False, f32_compare=True)


# ----------------------------------------------------------------------------
# Kernels
# ----------------------------------------------------------------------------
def _hoyer_reduce_kernel(thr_ref, x_ref, s2_ref, s1_ref, *,
                         block_rows, num_rows, tiles_per_split, num_tiles):
    """Raw-domain partial sums of clip(x, 0, |thr|) and its square.

    Full interior tiles take a mask-free hot path (cast/clip/square/partial
    sum only); only the last tile (and clamped duplicate tiles when the tile
    count does not divide by the core split) pays for iota + select.
    """
    c = pl.program_id(0)      # core split index
    t = pl.program_id(1)      # tile index within the split ("arbitrary")

    @pl.when(t == 0)
    def _():
        s2_ref[...] = jnp.zeros_like(s2_ref)
        s1_ref[...] = jnp.zeros_like(s1_ref)

    tile_id = c * tiles_per_split + t
    abs_thr = jnp.abs(thr_ref[0])

    def _accumulate(clipped):
        # VALU-only partial reduction (fold sublane groups of 8); the final
        # cross-lane reduce happens once, downstream.
        s2_ref[...] += jnp.sum((clipped * clipped).reshape(-1, 8, LANES), axis=0)
        s1_ref[...] += jnp.sum(clipped.reshape(-1, 8, LANES), axis=0)

    is_tail = tile_id >= num_tiles - 1   # genuine last tile OR clamped duplicate

    @pl.when(jnp.logical_not(is_tail))
    def _():
        x = x_ref[...].astype(jnp.float32)
        _accumulate(jnp.clip(x, 0.0, abs_thr))

    @pl.when(is_tail)
    def _():
        x = x_ref[...].astype(jnp.float32)
        row = tile_id * block_rows + lax.broadcasted_iota(
            jnp.int32, (block_rows, LANES), 0)
        _accumulate(jnp.where(row < num_rows, jnp.clip(x, 0.0, abs_thr), 0.0))


def _spike_folded_kernel(thr_ref, s2_ref, s1_ref, x_ref, o_ref, *,
                         x_thr_scale, cmp_f32):
    """out = 1.0 where x_raw >= |thr|*scale*hoyer else 0.0, with the final
    cross-lane reduce of the partial sums folded into this kernel.

    The folded threshold is recomputed per tile from the tiny resident
    partial-sum arrays (a couple of 16x128 reductions, negligible) so every
    grid step is independent -> safe under a parallel / multi-core split.
    """
    abs_thr = jnp.abs(thr_ref[0])
    hoyer = jnp.sum(s2_ref[...]) / (abs_thr * jnp.sum(s1_ref[...]))
    t_raw = abs_thr * jnp.float32(x_thr_scale) * hoyer
    x = x_ref[...]
    if cmp_f32:
        spike = x.astype(jnp.float32) >= t_raw
    else:
        spike = x >= t_raw.astype(x.dtype)
    # NOTE: rows past the end of the array in the ragged last tile hold
    # garbage 0/1 values; Pallas discards them on the partial block write.
    o_ref[...] = spike.astype(o_ref.dtype)


def _spike_scalar_kernel(t_ref, x_ref, o_ref, *, cmp_f32):
    """Streaming compare against a pre-folded scalar threshold (fixed / eval)."""
    x = x_ref[...]
    if cmp_f32:
        spike = x.astype(jnp.float32) >= t_ref[0]
    else:
        spike = x >= t_ref[0].astype(x.dtype)
    o_ref[...] = spike.astype(o_ref.dtype)


def _fused_kernel(thr_ref, x_ref, o_ref, hoyer_ref, tthr_ref, *,
                  x_thr_scale, num_rows, chunk_rows, num_chunks, cmp_f32):
    """VMEM-resident fused path: grid step 0 does the global Hoyer reduce,
    steps 1..num_chunks emit one output chunk each so the output writeback
    DMA of early chunks overlaps the compare of later chunks."""
    i = pl.program_id(0)
    tail_lo = (num_chunks - 1) * chunk_rows
    tail_rows = num_rows - tail_lo          # multiple of 8, in (0, chunk_rows]

    @pl.when(i == 0)
    def _():
        abs_thr = jnp.abs(thr_ref[0])

        def body(t, carry):
            s2v, s1v = carry
            start = pl.multiple_of(t * chunk_rows, chunk_rows)
            xs = x_ref[pl.ds(start, chunk_rows), :].astype(jnp.float32)
            cl = jnp.clip(xs, 0.0, abs_thr)
            s2v = s2v + jnp.sum((cl * cl).reshape(-1, 8, LANES), axis=0)
            s1v = s1v + jnp.sum(cl.reshape(-1, 8, LANES), axis=0)
            return (s2v, s1v)

        zeros = jnp.zeros((8, LANES), jnp.float32)
        s2v, s1v = lax.fori_loop(0, num_chunks - 1, body, (zeros, zeros))
        # Static tail chunk: exact in-bounds slice -> no masking anywhere.
        xs = x_ref[tail_lo:num_rows, :].astype(jnp.float32)
        cl = jnp.clip(xs, 0.0, abs_thr)
        s2v = s2v + jnp.sum((cl * cl).reshape(-1, 8, LANES), axis=0)
        s1v = s1v + jnp.sum(cl.reshape(-1, 8, LANES), axis=0)
        # hoyer = sum(c^2)/sum(|c|) with c = clamp(x/|thr|, 0, 1); the raw-
        # domain sums only differ by |thr| factors folded out of the loop.
        hoyer = jnp.sum(s2v) / (abs_thr * jnp.sum(s1v))
        hoyer_ref[0] = hoyer
        tthr_ref[0] = abs_thr * jnp.float32(x_thr_scale) * hoyer

    def _spike(xv):
        if cmp_f32:
            return (xv.astype(jnp.float32) >= tthr_ref[0]).astype(o_ref.dtype)
        return (xv >= tthr_ref[0].astype(xv.dtype)).astype(o_ref.dtype)

    @pl.when(jnp.logical_and(i >= 1, i <= num_chunks - 1))
    def _():
        # Full interior chunks.
        start = pl.multiple_of((i - 1) * chunk_rows, chunk_rows)
        o_ref[...] = _spike(x_ref[pl.ds(start, chunk_rows), :])

    @pl.when(i == num_chunks)
    def _():
        # Last (possibly ragged) chunk via static in-bounds slices; rows past
        # tail_rows of the output block are discarded by the partial write.
        o_ref[0:tail_rows, :] = _spike(x_ref[tail_lo:num_rows, :])


# ----------------------------------------------------------------------------
# Wrapper
# ----------------------------------------------------------------------------
def hoyer_biact_forward(x, threshold, running_hoyer_thr, *,
                        spike_type="sum", x_thr_scale=1.0, momentum=0.1,
                        training=True, force_two_pass=False):
    """Pallas implementation of HoyerBiAct.forward (spike_type 'sum'/'fixed')."""
    # TODO(synk): spike_type='cw' (per-channel Hoyer threshold) not implemented.
    assert spike_type in ("sum", "fixed")

    tune = _device_tuning()
    orig_shape = x.shape
    orig_dtype = x.dtype
    n = x.size

    # Flat lane-dense (rows, 128) view; rows kept a multiple of 8 so every
    # block tiles cleanly.  No pad / no dtype upcast copy in the common case.
    pad = (-n) % (8 * LANES)
    flat = x.reshape(-1)
    if pad:
        # TODO(synk): lane-ragged sizes still take one pad + one un-pad slice
        # copy; a 1-D ragged path would avoid it but is not worth the risk for
        # this module's conv-feature shapes (numel is normally 1024-aligned).
        flat = jnp.pad(flat, (0, pad))
    x2d = flat.reshape(-1, LANES)
    num_rows = x2d.shape[0]

    thr_smem = jnp.asarray(threshold, jnp.float32).reshape(1)
    abs_thr = jnp.abs(thr_smem[0])
    run_shape = jnp.shape(running_hoyer_thr)
    run_dtype = jnp.asarray(running_hoyer_thr).dtype
    running = jnp.asarray(running_hoyer_thr, jnp.float32).reshape(-1)

    # Compare in the input dtype on bf16-native VPUs (v6e/v7x); f32 otherwise.
    cmp_f32 = bool(orig_dtype == jnp.float32) or tune["f32_compare"]
    block_rows = min(tune["block_rows"], num_rows)
    vmem_limit = tune["vmem_limit"]
    lead_sem = "parallel"
    if tune["core_parallel"] and hasattr(pltpu, "CORE_PARALLEL"):
        lead_sem = pltpu.CORE_PARALLEL   # force the 2-TC split on v7x

    out2d = None
    hoyer_thr = None
    t_raw = None

    if not training:
        hoyer_thr = running[0]
        t_raw = (abs_thr * jnp.float32(x_thr_scale) * hoyer_thr).reshape(1)
    elif spike_type == "fixed":
        hoyer_thr = jnp.float32(1.0)
        t_raw = (abs_thr * jnp.float32(x_thr_scale) * hoyer_thr).reshape(1)
    elif (num_rows * LANES * x2d.dtype.itemsize <= tune["fused_cap"]
          and not force_two_pass):
        # ---- fused single kernel: 2N HBM bytes (read x once, write once) ----
        chunk_rows = min(FUSED_CHUNK_ROWS, num_rows)
        num_chunks = pl.cdiv(num_rows, chunk_rows)
        out2d, hoyer_vec = pl.pallas_call(
            functools.partial(_fused_kernel, x_thr_scale=float(x_thr_scale),
                              num_rows=num_rows, chunk_rows=chunk_rows,
                              num_chunks=num_chunks, cmp_f32=cmp_f32),
            out_shape=(jax.ShapeDtypeStruct((num_rows, LANES), orig_dtype),
                       jax.ShapeDtypeStruct((1,), jnp.float32)),
            grid_spec=pltpu.PrefetchScalarGridSpec(
                num_scalar_prefetch=1,
                grid=(1 + num_chunks,),
                in_specs=[pl.BlockSpec((num_rows, LANES),
                                       lambda i, thr: (0, 0))],   # resident
                out_specs=[pl.BlockSpec(
                               (chunk_rows, LANES),
                               lambda i, thr: (jnp.maximum(i - 1, 0), 0)),
                           pl.BlockSpec(memory_space=pltpu.MemorySpace.SMEM)],
                scratch_shapes=[pltpu.SMEM((1,), jnp.float32)]),
            compiler_params=pltpu.CompilerParams(
                dimension_semantics=("arbitrary",),
                vmem_limit_bytes=vmem_limit),
        )(thr_smem, x2d)
        hoyer_thr = hoyer_vec[0]
    else:
        # ---- pass 1: tiled global reduction (core-split leading axis) -------
        num_tiles = pl.cdiv(num_rows, block_rows)
        nsplit = NSPLIT if num_tiles >= NSPLIT else 1
        tiles_per_split = pl.cdiv(num_tiles, nsplit)

        def x_map(c, t, thr):
            # Clamp so duplicate tail tiles stay in bounds; their contribution
            # is masked to zero inside the kernel.
            return (jnp.minimum(c * tiles_per_split + t, num_tiles - 1), 0)

        s2p, s1p = pl.pallas_call(
            functools.partial(_hoyer_reduce_kernel, block_rows=block_rows,
                              num_rows=num_rows,
                              tiles_per_split=tiles_per_split,
                              num_tiles=num_tiles),
            out_shape=(jax.ShapeDtypeStruct((nsplit * 8, LANES), jnp.float32),
                       jax.ShapeDtypeStruct((nsplit * 8, LANES), jnp.float32)),
            grid_spec=pltpu.PrefetchScalarGridSpec(
                num_scalar_prefetch=1,
                grid=(nsplit, tiles_per_split),
                in_specs=[pl.BlockSpec((block_rows, LANES), x_map)],
                out_specs=[pl.BlockSpec((8, LANES), lambda c, t, thr: (c, 0)),
                           pl.BlockSpec((8, LANES), lambda c, t, thr: (c, 0))],
            ),
            compiler_params=pltpu.CompilerParams(
                dimension_semantics=(lead_sem, "arbitrary"),
                vmem_limit_bytes=vmem_limit),
        )(thr_smem, x2d)

        # Running-stat scalar (tiny XLA reduce; it is NOT on the spike
        # kernel's critical path -- the spike kernel consumes s2p/s1p itself).
        hoyer_thr = jnp.sum(s2p) / (abs_thr * jnp.sum(s1p))

        # ---- pass 2: elementwise spike with the reduction folded in ---------
        out2d = pl.pallas_call(
            functools.partial(_spike_folded_kernel,
                              x_thr_scale=float(x_thr_scale), cmp_f32=cmp_f32),
            out_shape=jax.ShapeDtypeStruct((num_rows, LANES), orig_dtype),
            grid_spec=pltpu.PrefetchScalarGridSpec(
                num_scalar_prefetch=1,
                grid=(num_tiles,),
                in_specs=[pl.BlockSpec((nsplit * 8, LANES),
                                       lambda i, thr: (0, 0)),    # resident
                          pl.BlockSpec((nsplit * 8, LANES),
                                       lambda i, thr: (0, 0)),    # resident
                          pl.BlockSpec((block_rows, LANES),
                                       lambda i, thr: (i, 0))],
                out_specs=pl.BlockSpec((block_rows, LANES),
                                       lambda i, thr: (i, 0)),
            ),
            compiler_params=pltpu.CompilerParams(
                dimension_semantics=("parallel",),
                vmem_limit_bytes=vmem_limit),
        )(thr_smem, s2p, s1p, x2d)

    if out2d is None:
        # fixed-threshold / eval modes: single streaming compare pass.
        num_tiles = pl.cdiv(num_rows, block_rows)
        out2d = pl.pallas_call(
            functools.partial(_spike_scalar_kernel, cmp_f32=cmp_f32),
            out_shape=jax.ShapeDtypeStruct((num_rows, LANES), orig_dtype),
            grid_spec=pltpu.PrefetchScalarGridSpec(
                num_scalar_prefetch=1,
                grid=(num_tiles,),
                in_specs=[pl.BlockSpec((block_rows, LANES),
                                       lambda i, t: (i, 0))],
                out_specs=pl.BlockSpec((block_rows, LANES),
                                       lambda i, t: (i, 0)),
            ),
            compiler_params=pltpu.CompilerParams(
                dimension_semantics=("parallel",),
                vmem_limit_bytes=vmem_limit),
        )(t_raw, x2d)

    if training:
        # NOTE: inherits NaN/Inf from hoyer when all inputs <= 0 or thr == 0,
        # exactly like the PyTorch module.
        new_running = (momentum * hoyer_thr
                       + (1.0 - momentum) * running).astype(run_dtype)
        new_running = new_running.reshape(run_shape)
    else:
        new_running = running_hoyer_thr

    if pad:
        out = out2d.reshape(-1)[:n].reshape(orig_shape)
    else:
        out = out2d.reshape(orig_shape)
    return out, new_running


if __name__ == "__main__":
    key = jax.random.PRNGKey(0)
    # NCHW input, like the PyTorch module (used on conv features).
    x = jax.random.normal(key, (2, 4, 16, 16), dtype=jnp.float32)

    # Deterministic parameter / buffer init matching HoyerBiAct.__init__:
    threshold = jnp.float32(1.0)                      # nn.Parameter(torch.tensor(1.0))
    running_hoyer_thr = jnp.zeros((1,), jnp.float32)  # num_features=1 for 'sum'

    # Pure-JAX reference of the same forward semantics.
    xs = x / jnp.abs(threshold)
    c = jnp.clip(xs, 0.0, 1.0)
    ref_thr = jnp.sum(c * c) / jnp.sum(jnp.abs(c))
    ref_out = jnp.where(xs >= 1.0 * ref_thr, 1.0, 0.0).astype(x.dtype)
    ref_running = 0.1 * ref_thr + 0.9 * running_hoyer_thr

    # Fused single-kernel path (small / VMEM-resident tensors).
    out_f, run_f = hoyer_biact_forward(
        x, threshold, running_hoyer_thr,
        spike_type="sum", x_thr_scale=1.0, momentum=0.1, training=True)

    # Two-pass tiled path (reduce kernel + folded spike kernel), forced.
    out_t, run_t = hoyer_biact_forward(
        x, threshold, running_hoyer_thr,
        spike_type="sum", x_thr_scale=1.0, momentum=0.1, training=True,
        force_two_pass=True)

    # Eval path (scalar-threshold streaming kernel).
    run_eval = jnp.full((1,), 0.3, jnp.float32)
    out_e, run_e = hoyer_biact_forward(
        x, threshold, run_eval,
        spike_type="sum", x_thr_scale=1.0, momentum=0.1, training=False)

    jax.block_until_ready((out_f, run_f, out_t, run_t, out_e, run_e))

    ref_e = jnp.where(xs >= 0.3, 1.0, 0.0).astype(x.dtype)

    assert out_f.shape == x.shape and out_t.shape == x.shape
    assert run_f.shape == running_hoyer_thr.shape and run_f.dtype == running_hoyer_thr.dtype
    assert run_e.shape == run_eval.shape and run_e.dtype == run_eval.dtype
    assert jnp.allclose(out_f, ref_out), "fused spike output mismatch"
    assert jnp.allclose(run_f, ref_running, rtol=1e-5), "fused running stat mismatch"
    assert jnp.allclose(out_t, ref_out), "two-pass spike output mismatch"
    assert jnp.allclose(run_t, ref_running, rtol=1e-5), "two-pass running stat mismatch"
    assert jnp.allclose(out_e, ref_e), "eval spike output mismatch"
    assert jnp.allclose(run_e, run_eval), "eval running stat must be unchanged"

    print("KERNEL_OK")
</pallas_src>

<mosaic_0001>
module attributes {stable_mosaic.version = 11 : i64} {
  func.func @_fused_kernel(%arg0: i32, %arg1: memref<1xf32, #tpu.memory_space<smem>>, %arg2: memref<16x128xf32, #tpu.memory_space<vmem>>, %arg3: memref<16x128xf32, #tpu.memory_space<vmem>>, %arg4: memref<1xf32, #tpu.memory_space<smem>>, %arg5: memref<1xf32, #tpu.memory_space<smem>>) attributes {dimension_semantics = [#tpu.dimension_semantics<arbitrary>], iteration_bounds = array<i64: 2>, scalar_prefetch = 1 : i64, scratch_operands = 1 : i64, tpu.core_type = #tpu.core_type<tc>, window_params = [{pipeline_mode = #tpu.pipeline_mode<synchronous>, transform_indices = @transform_0, window_bounds = array<i64: 16, 128>}, {transform_indices = @transform_1, window_bounds = array<i64: 16, 128>}, {transform_indices = @transform_2, window_bounds = array<i64: 1>}]} {
    %c0_i32 = arith.constant 0 : i32
    %0 = arith.cmpi eq, %arg0, %c0_i32 : i32
    %1 = arith.extui %0 : i1 to i32
    %c0_i32_0 = arith.constant 0 : i32
    %2 = arith.cmpi ne, %1, %c0_i32_0 : i32
    scf.if %2 {
      %c0 = arith.constant 0 : index
      %11 = memref.load %arg1[%c0] : memref<1xf32, #tpu.memory_space<smem>>
      %12 = math.absf %11 : f32
      %cst = arith.constant 0.000000e+00 : f32
      %13 = vector.broadcast %cst : f32 to vector<8x128xf32>
      %c0_i32_5 = arith.constant 0 : i32
      %c0_i32_6 = arith.constant 0 : i32
      %14 = arith.addi %c0_i32_5, %c0_i32_6 : i32
      %c1_i32_7 = arith.constant 1 : i32
      %15:2 = scf.for %arg6 = %c0_i32_5 to %14 step %c1_i32_7 iter_args(%arg7 = %13, %arg8 = %13) -> (vector<8x128xf32>, vector<8x128xf32>)  : i32 {
        %c16_i32 = arith.constant 16 : i32
        %42 = arith.muli %arg6, %c16_i32 : i32
        %43 = tpu.assume_multiple %42, 16 : i32
        %44 = arith.index_cast %43 : i32 to index
        %c0_19 = arith.constant 0 : index
        %45 = vector.load %arg2[%44, %c0_19] : memref<16x128xf32, #tpu.memory_space<vmem>>, vector<16x128xf32>
        %cst_20 = arith.constant 0.000000e+00 : f32
        %46 = vector.broadcast %cst_20 : f32 to vector<16x128xf32>
        %47 = arith.maximumf %46, %45 : vector<16x128xf32>
        %48 = vector.broadcast %12 : f32 to vector<16x128xf32>
        %49 = arith.minimumf %48, %47 : vector<16x128xf32>
        %50 = arith.mulf %49, %49 : vector<16x128xf32>
        %51 = vector.shape_cast %50 : vector<16x128xf32> to vector<2x8x128xf32>
        %cst_21 = arith.constant dense<0.000000e+00> : vector<8x128xf32>
        %52 = vector.multi_reduction <add>, %51, %cst_21 [0] : vector<2x8x128xf32> to vector<8x128xf32>
        %53 = arith.addf %arg7, %52 : vector<8x128xf32>
        %54 = vector.shape_cast %49 : vector<16x128xf32> to vector<2x8x128xf32>
        %cst_22 = arith.constant dense<0.000000e+00> : vector<8x128xf32>
        %55 = vector.multi_reduction <add>, %54, %cst_22 [0] : vector<2x8x128xf32> to vector<8x128xf32>
        %56 = arith.addf %arg8, %55 : vector<8x128xf32>
        scf.yield %53, %56 : vector<8x128xf32>, vector<8x128xf32>
      }
      %c0_i32_8 = arith.constant 0 : i32
      %c0_9 = arith.constant 0 : index
      %c0_10 = arith.constant 0 : index
      %16 = vector.load %arg2[%c0_9, %c0_10] : memref<16x128xf32, #tpu.memory_space<vmem>>, vector<16x128xf32>
      %cst_11 = arith.constant 0.000000e+00 : f32
      %17 = vector.broadcast %cst_11 : f32 to vector<16x128xf32>
      %18 = arith.maximumf %17, %16 : vector<16x128xf32>
      %19 = vector.broadcast %12 : f32 to vector<16x128xf32>
      %20 = arith.minimumf %19, %18 : vector<16x128xf32>
      %21 = arith.mulf %20, %20 : vector<16x128xf32>
      %22 = vector.shape_cast %21 : vector<16x128xf32> to vector<2x8x128xf32>
      %cst_12 = arith.constant dense<0.000000e+00> : vector<8x128xf32>
      %23 = vector.multi_reduction <add>, %22, %cst_12 [0] : vector<2x8x128xf32> to vector<8x128xf32>
      %24 = arith.addf %15#0, %23 : vector<8x128xf32>
      %25 = vector.shape_cast %20 : vector<16x128xf32> to vector<2x8x128xf32>
      %cst_13 = arith.constant dense<0.000000e+00> : vector<8x128xf32>
      %26 = vector.multi_reduction <add>, %25, %cst_13 [0] : vector<2x8x128xf32> to vector<8x128xf32>
      %27 = arith.addf %15#1, %26 : vector<8x128xf32>
      %28 = vector.shape_cast %24 : vector<8x128xf32> to vector<1x8x128xf32>
      %cst_14 = arith.constant dense<0.000000e+00> : vector<1xf32>
      %29 = vector.multi_reduction <add>, %28, %cst_14 [1, 2] : vector<1x8x128xf32> to vector<1xf32>
      %30 = vector.shape_cast %29 : vector<1xf32> to vector<1x1x1xf32>
      %31 = vector.extract %30[0, 0, 0] : f32 from vector<1x1x1xf32>
      %32 = vector.shape_cast %27 : vector<8x128xf32> to vector<1x8x128xf32>
      %cst_15 = arith.constant dense<0.000000e+00> : vector<1xf32>
      %33 = vector.multi_reduction <add>, %32, %cst_15 [1, 2] : vector<1x8x128xf32> to vector<1xf32>
      %34 = vector.shape_cast %33 : vector<1xf32> to vector<1x1x1xf32>
      %35 = vector.extract %34[0, 0, 0] : f32 from vector<1x1x1xf32>
      %36 = arith.mulf %12, %35 : f32
      %37 = arith.divf %31, %36 : f32
      %c0_16 = arith.constant 0 : index
      %38 = memref.load %arg4[%c0_16] : memref<1xf32, #tpu.memory_space<smem>>
      memref.store %37, %arg4[%c0_16] : memref<1xf32, #tpu.memory_space<smem>>
      %cst_17 = arith.constant 1.000000e+00 : f32
      %39 = arith.mulf %12, %cst_17 : f32
      %40 = arith.mulf %39, %37 : f32
      %c0_18 = arith.constant 0 : index
      %41 = memref.load %arg5[%c0_18] : memref<1xf32, #tpu.memory_space<smem>>
      memref.store %40, %arg5[%c0_18] : memref<1xf32, #tpu.memory_space<smem>>
    } else {
    }
    %c1_i32 = arith.constant 1 : i32
    %3 = arith.cmpi sge, %arg0, %c1_i32 : i32
    %c0_i32_1 = arith.constant 0 : i32
    %4 = arith.cmpi sle, %arg0, %c0_i32_1 : i32
    %5 = arith.andi %3, %4 : i1
    %6 = arith.extui %5 : i1 to i32
    %c0_i32_2 = arith.constant 0 : i32
    %7 = arith.cmpi ne, %6, %c0_i32_2 : i32
    scf.if %7 {
      %c1_i32_5 = arith.constant 1 : i32
      %11 = arith.subi %arg0, %c1_i32_5 : i32
      %c16_i32 = arith.constant 16 : i32
      %12 = arith.muli %11, %c16_i32 : i32
      %13 = tpu.assume_multiple %12, 16 : i32
      %14 = arith.index_cast %13 : i32 to index
      %c0 = arith.constant 0 : index
      %15 = vector.load %arg2[%14, %c0] : memref<16x128xf32, #tpu.memory_space<vmem>>, vector<16x128xf32>
      %c0_6 = arith.constant 0 : index
      %16 = memref.load %arg5[%c0_6] : memref<1xf32, #tpu.memory_space<smem>>
      %17 = vector.broadcast %16 : f32 to vector<16x128xf32>
      %18 = arith.cmpf oge, %15, %17 : vector<16x128xf32>
      %19 = arith.extui %18 : vector<16x128xi1> to vector<16x128xi32>
      %20 = arith.sitofp %19 : vector<16x128xi32> to vector<16x128xf32>
      %c0_7 = arith.constant 0 : index
      %c0_8 = arith.constant 0 : index
      %21 = vector.load %arg3[%c0_7, %c0_8] : memref<16x128xf32, #tpu.memory_space<vmem>>, vector<16x128xf32>
      tpu.vector_store %arg3[%c0_7, %c0_8], %20 {strides = array<i32>} : memref<16x128xf32, #tpu.memory_space<vmem>>, vector<16x128xf32>,
    } else {
    }
    %c1_i32_3 = arith.constant 1 : i32
    %8 = arith.cmpi eq, %arg0, %c1_i32_3 : i32
    %9 = arith.extui %8 : i1 to i32
    %c0_i32_4 = arith.constant 0 : i32
    %10 = arith.cmpi ne, %9, %c0_i32_4 : i32
    scf.if %10 {
      %c0 = arith.constant 0 : index
      %c0_5 = arith.constant 0 : index
      %11 = vector.load %arg2[%c0, %c0_5] : memref<16x128xf32, #tpu.memory_space<vmem>>, vector<16x128xf32>
      %c0_6 = arith.constant 0 : index
      %12 = memref.load %arg5[%c0_6] : memref<1xf32, #tpu.memory_space<smem>>
      %13 = vector.broadcast %12 : f32 to vector<16x128xf32>
      %14 = arith.cmpf oge, %11, %13 : vector<16x128xf32>
      %15 = arith.extui %14 : vector<16x128xi1> to vector<16x128xi32>
      %16 = arith.sitofp %15 : vector<16x128xi32> to vector<16x128xf32>
      %c0_7 = arith.constant 0 : index
      %c0_8 = arith.constant 0 : index
      %17 = vector.load %arg3[%c0_7, %c0_8] : memref<16x128xf32, #tpu.memory_space<vmem>>, vector<16x128xf32>
      tpu.vector_store %arg3[%c0_7, %c0_8], %16 {strides = array<i32>} : memref<16x128xf32, #tpu.memory_space<vmem>>, vector<16x128xf32>,
    } else {
    }
    return
  }
  func.func @transform_0(%arg0: i32, %arg1: memref<1xf32, #tpu.memory_space<smem>>) -> (i32, i32) {
    %c0_i32 = arith.constant 0 : i32
    %c0_i32_0 = arith.constant 0 : i32
    %c0_i32_1 = arith.constant 0 : i32
    return %c0_i32, %c0_i32_0 : i32, i32
  }
  func.func @transform_1(%arg0: i32, %arg1: memref<1xf32, #tpu.memory_space<smem>>) -> (i32, i32) {
    %c1_i32 = arith.constant 1 : i32
    %0 = arith.subi %arg0, %c1_i32 : i32
    %c0_i32 = arith.constant 0 : i32
    %1 = arith.maxsi %0, %c0_i32 : i32
    %c0_i32_0 = arith.constant 0 : i32
    %c0_i32_1 = arith.constant 0 : i32
    return %1, %c0_i32_0 : i32, i32
  }
  func.func @transform_2(%arg0: i32, %arg1: memref<1xf32, #tpu.memory_space<smem>>) -> i32 {
    %c0_i32 = arith.constant 0 : i32
    %c0_i32_0 = arith.constant 0 : i32
    return %c0_i32 : i32
  }
}

</mosaic_0001>

<llo_original>
// kernel: tpu_custom_call.1
$region0: #{tpu_custom_call.1}
  #allocation0 [shape = 'u32[]', space=smem, size = 0x4, offset = 0x4, fixed_abs, tag = 'smem constant byte address 0x4 - core index']
  #allocation1 [shape = 'u32[144,128]{1,0:T(1,128)}', space=vmem, size = 0x12000, scoped, tag = 'internal scratch']
  #allocation2 [shape = 'f32[1]{0:T(128)}', space=smem, size = 0x200, scoped, tag = 'scratch operand']
  #allocation3 [shape = 's32[1]{0}', space=sflag, size = 0x4, scoped, tag = 'scoped memory for tpu_custom_call.1']
  #allocation4 [shape = 'f32[1]{0:T(128)S(6)}', space=smem, size = 0x200, scoped, tag = 'prefetched SMEM operand 0']
  %s0 = inlined_call_operand.<no memory space> [shape: f32[1], index: 0, kind: input, shape index: {}]
  %s1 = inlined_call_operand.hbm [shape: f32[16,128], index: 1, kind: input, shape index: {}]
  %s2 = inlined_call_operand.hbm [shape: f32[16,128], index: 2, kind: output, shape index: {0}]
  %s3 = inlined_call_operand.hbm [shape: f32[1], index: 3, kind: output, shape index: {1}]
  %4 = xla_tuple %s2, %s3
  %s5 = sld [smem:[#allocation0]]
  $region61: #{tpu_custom_call.1} parent=0
    _
  %s7 = ssub.s32 1, %s5
  %s8 = scalar_select 0, %s7, %s5
  %9 = sst [smem:[#allocation4]] %s0
  $region1: #{tpu_custom_call.1} parent=0
    #allocation5 [shape = 'u8[8192]{0}', space=vmem, size = 0x2000, scoped, tag = 'input window, operand 1, single buffered']
    #allocation6 [shape = 's32[2]{0}', space=sflag, size = 0x8, scoped, tag = 'scoped memory for tpu_custom_call.1']
    #allocation7 [shape = 's32[2]{0}', space=sflag, size = 0x8, scoped, tag = 'scoped memory for tpu_custom_call.1']
    #allocation8 [shape = 's32[2]{0}', space=sflag, size = 0x8, scoped, tag = 'scoped memory for tpu_custom_call.1']
    #allocation9 [shape = 'u8[16384]{0}', space=vmem, size = 0x4000, scoped, tag = 'output window, operand 0']
    #allocation10 [shape = 'u8[512]{0}', space=smem, size = 0x200, scoped, tag = 'output window, operand 1, single buffered']
    %10 = vsyncpa [#allocation6], 0
    %11 = vsyncpa [#allocation7], 0
    %s12 = scalar_lea.sflag [#allocation7], 1
    %13 = vsyncpa %s12, 0
    %14 = vsyncpa [#allocation8], 0
    loop: start=0, step=1, limit=4
    $region2: #{tpu_custom_call.1} parent=1 // loop_pre_header
      _
    $region3: #{tpu_custom_call.1} parent=1 // loop_header
      %s16 = sphi 0, %s20
      %p17 = scmp.ge.s32.totalorder %s16, 4
      %s24 = sphi 0, %s24
      %s26 = sphi 0, %s24
      %s27 = sphi 0, %s26
      %s41 = sphi 0, %s27
      %s53 = sphi 0, %s55
      %s56 = sphi 0, %s53
      %s57 = sphi 0, %s56
      %s73 = sphi 0, %s57
      %s77 = sphi 0, %s77
      %s79 = sphi 0, %s77
      %s80 = sphi 0, %s79
      %s94 = sphi 0, %s80
    $region4: #{tpu_custom_call.1} parent=1 // loop_header_branch
      %19 = sbr.rel (%p17) target = $region8
    $region5: #{tpu_custom_call.1} parent=1 // loop_body
      %s21 = ssub.s32 %s16, 1
      %s22 = ssub.s32 %s16, 2
      %s23 = sadd.s32 %s16, 1
      %s25 = sadd.s32 %s24, 1
      %p28 = scmp.eq.s32.totalorder %s16, 1
      %p29 = scmp.ne.s32.totalorder %s24, %s26
      %p30 = scmp.eq.s32.totalorder %s16, 0
      %p31 = por %p29, %p30
      %p32 = scmp.ne.s32.totalorder %s24, %s26
      %p33 = scmp.eq.s32.totalorder %s21, 1
      %p34 = por %p32, %p33
      %p35 = scmp.ne.s32.totalorder %s26, %s27
      %p36 = scmp.eq.s32.totalorder %s21, 0
      %p37 = por %p35, %p36
      %p38 = scmp.ne.s32.totalorder %s26, %s27
      %p39 = scmp.eq.s32.totalorder %s22, 1
      %p40 = por %p38, %p39
      %p42 = scmp.ne.s32.totalorder %s27, %s41
      %p43 = scmp.eq.s32.totalorder %s22, 0
      %p44 = por %p42, %p43
      %s45 = ssub.s32 %s16, 1
      %p46 = scmp.gt.s32.totalorder %s45, 0
      %s47 = scalar_select %p46, %s45, 0
      %s48 = ssub.s32 %s23, 1
      %p49 = scmp.gt.s32.totalorder %s48, 0
      %s50 = scalar_select %p49, %s48, 0
      %s51 = ssub.s32 %s47, %s50
      %p52 = scmp.eq.s32.totalorder %s51, 0
      %s54 = sadd.s32 %s53, 1
      %s55 = scalar_select %p52, %s53, %s54
      %p58 = pneg %p52
      %p59 = scmp.eq.s32.totalorder %s16, 1
      %p60 = por %p58, %p59
      %p61 = scmp.ne.s32.totalorder %s53, %s56
      %p62 = scmp.eq.s32.totalorder %s16, 0
      %p63 = por %p61, %p62
      %p64 = scmp.ne.s32.totalorder %s53, %s56
      %p65 = scmp.eq.s32.totalorder %s21, 1
      %p66 = por %p64, %p65
      %p67 = scmp.ne.s32.totalorder %s56, %s57
      %p68 = scmp.eq.s32.totalorder %s21, 0
      %p69 = por %p67, %p68
      %p70 = scmp.ne.s32.totalorder %s56, %s57
      %p71 = scmp.eq.s32.totalorder %s22, 1
      %p72 = por %p70, %p71
      %p74 = scmp.ne.s32.totalorder %s57, %s73
      %p75 = scmp.eq.s32.totalorder %s22, 0
      %p76 = por %p74, %p75
      %s78 = sadd.s32 %s77, 1
      %p81 = scmp.eq.s32.totalorder %s16, 1
      %p82 = scmp.ne.s32.totalorder %s77, %s79
      %p83 = scmp.eq.s32.totalorder %s16, 0
      %p84 = por %p82, %p83
      %p85 = scmp.ne.s32.totalorder %s77, %s79
      %p86 = scmp.eq.s32.totalorder %s21, 1
      %p87 = por %p85, %p86
      %p88 = scmp.ne.s32.totalorder %s79, %s80
      %p89 = scmp.eq.s32.totalorder %s21, 0
      %p90 = por %p88, %p89
      %p91 = scmp.ne.s32.totalorder %s79, %s80
      %p92 = scmp.eq.s32.totalorder %s22, 1
      %p93 = por %p91, %p92
      %p95 = scmp.ne.s32.totalorder %s80, %s94
      %p96 = scmp.eq.s32.totalorder %s22, 0
      %p97 = por %p95, %p96
      %p98 = scmp.le.s32.totalorder 1, %s16
      %p99 = scmp.lt.s32.totalorder %s16, 3
      %p100 = pnand %p98, %p99
      %p101 = pneg %p100
      // Predicated region
      $region9: #{tpu_custom_call.1} parent=5 // pred_check
        _
      $region10: #{tpu_custom_call.1} parent=5 // pred_check_branch
        %103 = sbr.rel (%p100) target = $region12
      $region11: #{tpu_custom_call.1} parent=5 // pred_region
        %s104 = ssub.s32 %s16, 1
        // Predicated region
        $region13: #{tpu_custom_call.1} parent=11 // pred_check
          %p105 = pneg %p37
        $region14: #{tpu_custom_call.1} parent=11 // pred_check_branch
          %107 = sbr.rel (%p105) target = $region16
        $region15: #{tpu_custom_call.1} parent=11 // pred_region
          %s109 = ssub.s32 256, 256
          %110 = vsyncadd [#allocation6], %s109
          %s111 = sshll.u32 [#allocation5], 4
          %s112 = int_to_ptr.vmem [resolvable:$true] %s111
          %117 = dma.hbm_to_vmem [thread:$0]  %s1, 256, %s112, [#allocation6], 128, 128, 8
        $region16: #{tpu_custom_call.1} parent=11 // pred_fallthru
          _
      $region12: #{tpu_custom_call.1} parent=5 // pred_fallthru
        _
      %p118 = scmp.lt.s32.totalorder %s16, 2
      // Predicated region
      $region17: #{tpu_custom_call.1} parent=5 // pred_check
        %p119 = pneg %p118
      $region18: #{tpu_custom_call.1} parent=5 // pred_check_branch
        %121 = sbr.rel (%p119) target = $region20
      $region19: #{tpu_custom_call.1} parent=5 // pred_region
        _
      $region20: #{tpu_custom_call.1} parent=5 // pred_fallthru
        _
      %p122 = scmp.le.s32.totalorder 1, %s16
      %p123 = scmp.lt.s32.totalorder %s16, 3
      %p124 = pnand %p122, %p123
      %p125 = pneg %p124
      // Predicated region
      $region21: #{tpu_custom_call.1} parent=5 // pred_check
        _
      $region22: #{tpu_custom_call.1} parent=5 // pred_check_branch
        %127 = sbr.rel (%p124) target = $region24
      $region23: #{tpu_custom_call.1} parent=5 // pred_region
        %s128 = ssub.s32 %s16, 1
        // Predicated region
        $region25: #{tpu_custom_call.1} parent=23 // pred_check
          %p129 = pneg %p37
        $region26: #{tpu_custom_call.1} parent=23 // pred_check_branch
          %131 = sbr.rel (%p129) target = $region28
        $region27: #{tpu_custom_call.1} parent=23 // pred_region
          %132 = dma.done [#allocation6], 256
        $region28: #{tpu_custom_call.1} parent=23 // pred_fallthru
          _
        %p133 = pneg %p37
        %p134 = pneg %p34
        %p135 = pneg %p69
        %p136 = pneg %p66
        %s137 = sand.u32 %s56, 1
        %s138 = scalar_lea.sflag [#allocation7], %s137
        %s139 = sand.u32 %s56, 1
        %s140 = smul.addr %s139, 16
        %s141 = scalar_lea.vmem [#allocation9], %s140
        %p142 = pneg %p90
        %p143 = pneg %p87
        %s144 = ssub.s32 %s21, 1
        %p145 = scmp.gt.s32.totalorder %s144, 0
        %s146 = scalar_select %p145, %s144, 0
        %s147 = smul.u32 2, %s146
        %p148 = scmp.eq.s32.totalorder %s21, 0
        // Predicated region
        $region29: #{tpu_custom_call.1} parent=23 // pred_check
          %p149 = pneg %p148
        $region30: #{tpu_custom_call.1} parent=23 // pred_check_branch
          %151 = sbr.rel (%p149) target = $region32
        $region31: #{tpu_custom_call.1} parent=23 // pred_region
          %s152 = sld [smem:[#allocation4]]
          %s153 = sand.u32 2147483647, %s152
          %v154 = vld [vmem:[#allocation5] sm:$0xff]
          %v155 = vld [vmem:[#allocation5 + $0x8] sm:$0xff]
          %v156 = vmax.f32 %v154, 0.0
          %v157 = vmax.f32 %v155, 0.0
          %v158 = vstv %s153
          %v159 = vmin.f32 %v158, %v156
          %v160 = vmin.f32 %v158, %v157
          %v161 = vmul.f32 %v159, %v159
          %v162 = vmul.f32 %v160, %v160
          %v163 = vadd.f32 %v161, %v162
          %v164 = vadd.f32 %v163, 0.0
          %v165 = vadd.f32 %v159, %v160
          %v166 = vadd.f32 %v165, 0.0
          %167 = vadd.xlane.f32.xlu0 %v164
          %v168 = vpop.xlane.xlu0 %167
          %v169 = vrot.slane %v168, 4
          %v170 = vadd.f32 %v168, %v169
          %v171 = vrot.slane %v170, 2
          %v172 = vadd.f32 %v170, %v171
          %v173 = vrot.slane %v172, 1
          %v174 = vadd.f32 %v172, %v173
          %s175 = vtos %v174
          %176 = vadd.xlane.f32.xlu0 %v166
          %v177 = vpop.xlane.xlu0 %176
          %v178 = vrot.slane %v177, 4
          %v179 = vadd.f32 %v177, %v178
          %v180 = vrot.slane %v179, 2
          %v181 = vadd.f32 %v179, %v180
          %v182 = vrot.slane %v181, 1
          %v183 = vadd.f32 %v181, %v182
          %s184 = vtos %v183
          %s185 = smul.f32 %s153, %s184
          %v186 = vstv %s185
          %v187 = vrcp.pop %v186
          %s188 = vtos %v187
          %s189 = smul.f32 %s175, %s188
          %s190 = scalar_lea.smem [#allocation10], 0
          %191 = sst [smem:[%s190]] %s189
          %s192 = smul.f32 %s153, %s189
          %s193 = scalar_lea.smem [#allocation2], 0
          %194 = sst [smem:[%s193]] %s192
        $region32: #{tpu_custom_call.1} parent=23 // pred_fallthru
          _
        %p195 = scmp.ge.s32.totalorder %s21, 1
        %p196 = scmp.le.s32.totalorder %s21, 0
        %p197 = pnand %p195, %p196
        %p198 = pneg %p197
        // Predicated region
        $region33: #{tpu_custom_call.1} parent=23 // pred_check
          _
        $region34: #{tpu_custom_call.1} parent=23 // pred_check_branch
          %200 = sbr.rel (%p197) target = $region36
        $region35: #{tpu_custom_call.1} parent=23 // pred_region
          %s201 = ssub.s32 %s21, 1
          %s202 = smul.u32 %s201, 16
          %s203 = scalar_lea.vmem [#allocation5], %s202
          %v204 = vld [vmem:[%s203] sm:$0xff]
          %v205 = vld [vmem:[%s203 + $0x8] sm:$0xff]
          %s206 = sld [smem:[#allocation2]]
          %v207 = vstv %s206
          %vm208 = vcmp.ge.f32.partialorder %v204, %v207
          %vm209 = vcmp.ge.f32.partialorder %v205, %v207
          %v210 = vsel %vm208, 1, 0
          %v211 = vsel %vm209, 1, 0
          %v212 = vcvt.s32.f32 %v210
          %v213 = vcvt.s32.f32 %v211
          %214 = vst [vmem:[%s141] sm:$0xff] %v212
          %215 = vst [vmem:[%s141 + $0x8] sm:$0xff] %v213
        $region36: #{tpu_custom_call.1} parent=23 // pred_fallthru
          _
        %p216 = scmp.eq.s32.totalorder %s21, 1
        // Predicated region
        $region37: #{tpu_custom_call.1} parent=23 // pred_check
          %p217 = pneg %p216
        $region38: #{tpu_custom_call.1} parent=23 // pred_check_branch
          %219 = sbr.rel (%p217) target = $region40
        $region39: #{tpu_custom_call.1} parent=23 // pred_region
          %v220 = vld [vmem:[#allocation5] sm:$0xff]
          %v221 = vld [vmem:[#allocation5 + $0x8] sm:$0xff]
          %s222 = sld [smem:[#allocation2]]
          %v223 = vstv %s222
          %vm224 = vcmp.ge.f32.partialorder %v220, %v223
          %vm225 = vcmp.ge.f32.partialorder %v221, %v223
          %v226 = vsel %vm224, 1, 0
          %v227 = vsel %vm225, 1, 0
          %v228 = vcvt.s32.f32 %v226
          %v229 = vcvt.s32.f32 %v227
          %230 = vst [vmem:[%s141] sm:$0xff] %v228
          %231 = vst [vmem:[%s141 + $0x8] sm:$0xff] %v229
        $region40: #{tpu_custom_call.1} parent=23 // pred_fallthru
          _
        %s232 = sand.u32 %s56, 1
        %s233 = scalar_lea.sflag [#allocation7], %s232
        %s234 = sand.u32 %s56, 1
        %s235 = smul.addr %s234, 16
        %s236 = scalar_lea.vmem [#allocation9], %s235
        // Predicated region
        $region41: #{tpu_custom_call.1} parent=23 // pred_check
          %p237 = pneg %p66
        $region42: #{tpu_custom_call.1} parent=23 // pred_check_branch
          %239 = sbr.rel (%p237) target = $region44
        $region43: #{tpu_custom_call.1} parent=23 // pred_region
          %s240 = ssub.s32 %s21, 1
          %p241 = scmp.gt.s32.totalorder %s240, 0
          %s242 = scalar_select %p241, %s240, 0
          %s243 = smul.u32 2, %s242
          %s245 = ssub.s32 256, 256
          %246 = vsyncadd %s233, %s245
          %s247 = smul.addr %s243, 128
          %s248 = scalar_lea.hbm %s2, %s247
          %s249 = sshll.u32 %s236, 4
          %s250 = int_to_ptr.vmem [resolvable:$true] %s249
          %255 = dma.vmem_to_hbm [thread:$0]  %s250, 256, %s248, %s233, 128, 128, 8
        $region44: #{tpu_custom_call.1} parent=23 // pred_fallthru
          _
        // Predicated region
        $region45: #{tpu_custom_call.1} parent=23 // pred_check
          %p256 = pneg %p87
        $region46: #{tpu_custom_call.1} parent=23 // pred_check_branch
          %258 = sbr.rel (%p256) target = $region48
        $region47: #{tpu_custom_call.1} parent=23 // pred_region
          %s260 = ssub.s32 16, 16
          %261 = vsyncadd [#allocation8], %s260
          %264 = dma.smem_to_hbm [#allocation10], 16, %s3, [#allocation8]
        $region48: #{tpu_custom_call.1} parent=23 // pred_fallthru
          _
        // Predicated region
        $region49: #{tpu_custom_call.1} parent=23 // pred_check
          %p265 = pneg %p87
        $region50: #{tpu_custom_call.1} parent=23 // pred_check_branch
          %267 = sbr.rel (%p265) target = $region52
        $region51: #{tpu_custom_call.1} parent=23 // pred_region
          %268 = dma.done [#allocation8], 16
        $region52: #{tpu_custom_call.1} parent=23 // pred_fallthru
          _
        %269 = sfence
      $region24: #{tpu_custom_call.1} parent=5 // pred_fallthru
        _
      %p270 = scmp.le.s32.totalorder 2, %s16
      // Predicated region
      $region53: #{tpu_custom_call.1} parent=5 // pred_check
        %p271 = pneg %p270
      $region54: #{tpu_custom_call.1} parent=5 // pred_check_branch
        %273 = sbr.rel (%p271) target = $region56
      $region55: #{tpu_custom_call.1} parent=5 // pred_region
        %s274 = ssub.s32 %s16, 2
        // Predicated region
        $region57: #{tpu_custom_call.1} parent=55 // pred_check
          %p275 = pneg %p72
        $region58: #{tpu_custom_call.1} parent=55 // pred_check_branch
          %277 = sbr.rel (%p275) target = $region60
        $region59: #{tpu_custom_call.1} parent=55 // pred_region
          %s278 = sand.u32 %s57, 1
          %s279 = scalar_lea.sflag [#allocation7], %s278
          %s280 = sand.u32 %s57, 1
          %s281 = smul.addr %s280, 16
          %s282 = scalar_lea.vmem [#allocation9], %s281
          %283 = dma.done %s279, 256
        $region60: #{tpu_custom_call.1} parent=55 // pred_fallthru
          _
      $region56: #{tpu_custom_call.1} parent=5 // pred_fallthru
        _
    $region6: #{tpu_custom_call.1} parent=1 // loop_footer
      %s20 = sadd.s32 1, %s16
    $region7: #{tpu_custom_call.1} parent=1 // loop_footer_branch
      %15 = sbr.rel target = $region3
    $region8: #{tpu_custom_call.1} parent=1 // loop_exit
      _
    %284 = vsyncpa [#allocation6], 1
    %s285 = scalar_lea.sflag [#allocation6], 1
    %286 = vsyncpa %s285, 1
    %287 = vsyncpa [#allocation7], 1
    %s288 = scalar_lea.sflag [#allocation7], 1
    %289 = vsyncpa %s288, 1
    %290 = vsyncpa [#allocation8], 1
    %s291 = scalar_lea.sflag [#allocation8], 1
    %292 = vsyncpa %s291, 1

</llo_original>
